<compile_context>
chip_gen: v7x
topology: tpu7x:2x2x1
jax: 0.10.0
libtpu: 0.0.40
codegen_flags: <defaults>
</compile_context>

<pallas_src>
import functools

import jax
import jax.numpy as jnp
import numpy as np
from jax.experimental import pallas as pl
from jax.experimental.pallas import tpu as pltpu


def _round_up(x, m):
    return (x + m - 1) // m * m


def _pad2(a, rows, cols):
    return jnp.pad(a, ((0, rows - a.shape[0]), (0, cols - a.shape[1])))


def _mlp_kernel(n_hidden, residual_start, residual_end, has_y, modulation, *refs):
    """Fused MLP forward over one batch tile (all feature dims lane-padded)."""
    idx = 0
    x_ref = refs[idx]; idx += 1
    if has_y:
        y_ref = refs[idx]; idx += 1
    w1_ref, b1_ref = refs[idx], refs[idx + 1]; idx += 2
    if has_y:
        w2_ref, b2_ref = refs[idx], refs[idx + 1]; idx += 2
        if modulation == "film":
            w3_ref, b3_ref = refs[idx], refs[idx + 1]; idx += 2
    if n_hidden > 0:
        wh_ref, bh_ref = refs[idx], refs[idx + 1]; idx += 2
    wf_ref, bf_ref = refs[idx], refs[idx + 1]; idx += 2
    o_ref = refs[idx]

    x = x_ref[...]                                  # f32 (block_m, dim_in_p)
    xb = x.astype(jnp.bfloat16)

    # out = lin1(x)   (bf16 operands, f32 accumulation on the MXU)
    out = jnp.dot(xb, w1_ref[...], preferred_element_type=jnp.float32) + b1_ref[...]

    if has_y:
        yb = y_ref[...].astype(jnp.bfloat16)
        out2 = jnp.dot(yb, w2_ref[...], preferred_element_type=jnp.float32) + b2_ref[...]
        if modulation == "+":
            out = out + out2
        elif modulation == "*":
            out = out * out2
        elif modulation == "film":
            out3 = jnp.dot(yb, w3_ref[...], preferred_element_type=jnp.float32) + b3_ref[...]
            out = out * jax.nn.sigmoid(out2) + out3
        else:
            raise ValueError(f"Unknown modulation parameter: {modulation}")

    # out = relu(out) + (x if residual_start else 0)
    out = jnp.maximum(out, 0.0)
    if residual_start:
        out = out + x

    # hidden residual layers: out = out + lin_i(relu(out))
    for i in range(n_hidden):
        h = jnp.maximum(out, 0.0).astype(jnp.bfloat16)
        out = out + jnp.dot(h, wh_ref[i], preferred_element_type=jnp.float32) + bh_ref[i]

    # final: lin_final(relu(out)) + (out if residual_end else 0)
    h = jnp.maximum(out, 0.0).astype(jnp.bfloat16)
    final = jnp.dot(h, wf_ref[...], preferred_element_type=jnp.float32) + bf_ref[...]
    if residual_end:
        final = final + out

    o_ref[...] = final.astype(o_ref.dtype)


class MLPPallas:
    """Pallas re-implementation of models/MLP.py::MLP (forward only)."""

    _LANE = 128
    _VMEM_BUDGET = 44 * 1024 * 1024   # target budget when picking the batch tile

    def __init__(self, dim_in, dim_out, width, nb_layers, skip=1, bias=True,
                 dim_in_2=None, modulation="+", key=jax.random.PRNGKey(0)):
        self.dim_in = dim_in
        self.dim_out = dim_out
        self.width = width
        self.nb_layers = nb_layers
        self.skip = skip                      # NOTE: unused in forward (as in the reference)
        self.modulation = modulation
        self.dim_in_2 = dim_in_2
        self.residual_start = dim_in == width
        self.residual_end = dim_out == width
        self.n_hidden = max(nb_layers - 2, 0)

        # lane-padded feature dims (multiples of 128)
        self.dim_in_p = _round_up(dim_in, self._LANE)
        self.width_p = _round_up(width, self._LANE)
        self.dim_out_p = _round_up(dim_out, self._LANE)
        self.dim_in_2_p = _round_up(dim_in_2, self._LANE) if dim_in_2 is not None else None

        def _linear(k, fan_in, fan_out):
            # deterministic PyTorch-style uniform(-1/sqrt(fan_in), 1/sqrt(fan_in))
            kw, kb = jax.random.split(k)
            bound = 1.0 / np.sqrt(fan_in)
            w = jax.random.uniform(kw, (fan_in, fan_out), jnp.float32, -bound, bound)
            b = jax.random.uniform(kb, (1, fan_out), jnp.float32, -bound, bound)
            if not bias:
                b = jnp.zeros_like(b)
            return w, b

        keys = jax.random.split(key, 4 + max(self.n_hidden, 1))

        # logical (unpadded, f32) parameters — used by the pure-JAX reference
        self.w1, self.b1 = _linear(keys[0], dim_in, width)
        if dim_in_2 is not None:
            self.w2, self.b2 = _linear(keys[1], dim_in_2, width)
            if modulation == "film":
                self.w3, self.b3 = _linear(keys[2], dim_in_2, width)
        if self.n_hidden > 0:
            whs, bhs = [], []
            for i in range(self.n_hidden):
                w, b = _linear(keys[4 + i], width, width)
                whs.append(w)
                bhs.append(b)
            self.wh = jnp.stack(whs)                       # (n_hidden, width, width)
            self.bh = jnp.stack(bhs)                       # (n_hidden, 1, width)
        self.wf, self.bf = _linear(keys[3], width, dim_out)

        # kernel parameters: zero-padded to 128 lanes, weights in bf16, biases f32
        self.w1_k = _pad2(self.w1, self.dim_in_p, self.width_p).astype(jnp.bfloat16)
        self.b1_k = _pad2(self.b1, 1, self.width_p)
        if dim_in_2 is not None:
            self.w2_k = _pad2(self.w2, self.dim_in_2_p, self.width_p).astype(jnp.bfloat16)
            self.b2_k = _pad2(self.b2, 1, self.width_p)
            if modulation == "film":
                self.w3_k = _pad2(self.w3, self.dim_in_2_p, self.width_p).astype(jnp.bfloat16)
                self.b3_k = _pad2(self.b3, 1, self.width_p)
        if self.n_hidden > 0:
            self.wh_k = jnp.stack(
                [_pad2(self.wh[i], self.width_p, self.width_p) for i in range(self.n_hidden)]
            ).astype(jnp.bfloat16)                         # (n_hidden, W_p, W_p)
            self.bh_k = jnp.stack(
                [_pad2(self.bh[i], 1, self.width_p) for i in range(self.n_hidden)]
            )                                              # (n_hidden, 1, W_p)
        self.wf_k = _pad2(self.wf, self.width_p, self.dim_out_p).astype(jnp.bfloat16)
        self.bf_k = _pad2(self.bf, 1, self.dim_out_p)

    # --- wrapper -----------------------------------------------------------

    def _weight_args(self, has_y):
        """Kernel weight/bias arrays in the order the kernel unpacks them."""
        args = [self.w1_k, self.b1_k]
        if has_y:
            args += [self.w2_k, self.b2_k]
            if self.modulation == "film":
                args += [self.w3_k, self.b3_k]
        if self.n_hidden > 0:
            args += [self.wh_k, self.bh_k]
        args += [self.wf_k, self.bf_k]
        return args

    def _vmem_estimate(self, block_m, has_y):
        """Rough VMEM footprint (bytes) for a given batch tile."""
        b = 2 * block_m * self.dim_in_p * 4               # x (double-buffered)
        if has_y:
            b += 2 * block_m * self.dim_in_2_p * 4
        b += 2 * block_m * self.dim_out_p * 4             # output (double-buffered)
        b += 2 * sum(int(a.nbytes) for a in self._weight_args(has_y))
        b += 6 * block_m * self.width_p * 4               # f32 temporaries / spill headroom
        return b

    def __call__(self, x, y=None):
        N = x.shape[0]
        has_y = y is not None

        # pick the largest batch tile (256-multiples preferred) that fits VMEM
        block_m = 128
        for cand in (512, 256, 128):
            if self._vmem_estimate(cand, has_y) <= self._VMEM_BUDGET:
                block_m = cand
                break
        block_m = min(block_m, _round_up(N, 8))           # don't over-pad tiny batches
        n_pad = _round_up(N, block_m)
        grid = (n_pad // block_m,)

        # zero-pad activations (batch to a tile multiple, features to 128 lanes)
        x_p = jnp.pad(x.astype(jnp.float32),
                      ((0, n_pad - N), (0, self.dim_in_p - self.dim_in)))
        inputs = [x_p]
        in_specs = [pl.BlockSpec((block_m, self.dim_in_p), lambda i: (i, 0))]
        if has_y:
            y_p = jnp.pad(y.astype(jnp.float32),
                          ((0, n_pad - N), (0, self.dim_in_2_p - self.dim_in_2)))
            inputs.append(y_p)
            in_specs.append(pl.BlockSpec((block_m, self.dim_in_2_p), lambda i: (i, 0)))

        def _full_spec(arr):
            nd = arr.ndim
            return pl.BlockSpec(arr.shape, lambda i, _nd=nd: (0,) * _nd)

        weight_args = self._weight_args(has_y)
        inputs += weight_args
        in_specs += [_full_spec(a) for a in weight_args]

        kernel = functools.partial(
            _mlp_kernel, self.n_hidden, self.residual_start, self.residual_end,
            has_y, self.modulation)

        # cost estimate (advisory)
        flops_row = 2 * self.dim_in_p * self.width_p
        if has_y:
            flops_row += 2 * self.dim_in_2_p * self.width_p * (2 if self.modulation == "film" else 1)
        flops_row += self.n_hidden * 2 * self.width_p * self.width_p
        flops_row += 2 * self.width_p * self.dim_out_p
        bytes_accessed = int(x_p.nbytes) + (int(y_p.nbytes) if has_y else 0)
        bytes_accessed += sum(int(a.nbytes) for a in weight_args)
        bytes_accessed += n_pad * self.dim_out_p * 4
        cost = pl.CostEstimate(
            flops=int(n_pad * flops_row),
            transcendentals=int(n_pad * self.width_p) if (has_y and self.modulation == "film") else 0,
            bytes_accessed=int(bytes_accessed))

        vmem_limit = int(min(max(self._vmem_estimate(block_m, has_y) + (8 << 20), 32 << 20),
                             56 << 20))   # stay under v7x's 64 MiB physical VMEM

        out = pl.pallas_call(
            kernel,
            out_shape=jax.ShapeDtypeStruct((n_pad, self.dim_out_p), jnp.float32),
            grid_spec=pltpu.PrefetchScalarGridSpec(
                num_scalar_prefetch=0,
                grid=grid,
                in_specs=in_specs,
                out_specs=pl.BlockSpec((block_m, self.dim_out_p), lambda i: (i, 0)),
            ),
            compiler_params=pltpu.CompilerParams(
                dimension_semantics=("parallel",),
                vmem_limit_bytes=vmem_limit),
            cost_estimate=cost,
        )(*inputs)

        return out[:N, :self.dim_out]

    # --- pure-JAX reference (mirrors the PyTorch forward; same bf16 matmul path)
    def reference(self, x, y=None):
        def bdot(a, w):
            return jnp.dot(a.astype(jnp.bfloat16), w.astype(jnp.bfloat16),
                           preferred_element_type=jnp.float32)

        out = bdot(x, self.w1) + self.b1
        if y is not None:
            out2 = bdot(y, self.w2) + self.b2
            if self.modulation == "+":
                out = out + out2
            elif self.modulation == "*":
                out = out * out2
            elif self.modulation == "film":
                out3 = bdot(y, self.w3) + self.b3
                out = out * jax.nn.sigmoid(out2) + out3
        out = jnp.maximum(out, 0.0) + (x if self.residual_start else 0.0)
        for i in range(self.n_hidden):
            out = out + bdot(jnp.maximum(out, 0.0), self.wh[i]) + self.bh[i]
        final = bdot(jnp.maximum(out, 0.0), self.wf) + self.bf
        return final + (out if self.residual_end else 0.0)


if __name__ == "__main__":
    key = jax.random.PRNGKey(0)
    k1, k2, k3 = jax.random.split(key, 3)

    # Case 1: single-input MLP, ragged batch (exercises batch padding),
    #         residual_end active (dim_out == width)
    N, dim_in, width, dim_out, nb_layers = 20, 16, 32, 32, 3
    mlp = MLPPallas(dim_in, dim_out, width, nb_layers, key=k1)
    x = jax.random.normal(k2, (N, dim_in), jnp.float32)
    out = jax.block_until_ready(mlp(x))
    ref = jax.block_until_ready(mlp.reference(x))
    assert out.shape == (N, dim_out)
    np.testing.assert_allclose(np.asarray(out), np.asarray(ref), rtol=5e-3, atol=5e-3)

    # Case 2: two-input MLP with FiLM modulation, residual_start active (dim_in == width)
    N2, dim_in2, dim_y, width2, dim_out2, nb_layers2 = 16, 32, 8, 32, 16, 4
    mlp2 = MLPPallas(dim_in2, dim_out2, width2, nb_layers2, dim_in_2=dim_y,
                     modulation="film", key=k2)
    x2 = jax.random.normal(k3, (N2, dim_in2), jnp.float32)
    y2 = jax.random.normal(k1, (N2, dim_y), jnp.float32)
    out2 = jax.block_until_ready(mlp2(x2, y2))
    ref2 = jax.block_until_ready(mlp2.reference(x2, y2))
    assert out2.shape == (N2, dim_out2)
    np.testing.assert_allclose(np.asarray(out2), np.asarray(ref2), rtol=5e-3, atol=5e-3)

    print("KERNEL_OK")
</pallas_src>

<mosaic_0001>
module attributes {stable_mosaic.version = 11 : i64} {
  func.func @_mlp_kernel(%arg0: i32, %arg1: memref<24x128xf32, #tpu.memory_space<vmem>>, %arg2: memref<128x128xbf16, #tpu.memory_space<vmem>>, %arg3: memref<1x128xf32, #tpu.memory_space<vmem>>, %arg4: memref<1x128x128xbf16, #tpu.memory_space<vmem>>, %arg5: memref<1x1x128xf32, #tpu.memory_space<vmem>>, %arg6: memref<128x128xbf16, #tpu.memory_space<vmem>>, %arg7: memref<1x128xf32, #tpu.memory_space<vmem>>, %arg8: memref<24x128xf32, #tpu.memory_space<vmem>>) attributes {dimension_semantics = [#tpu.dimension_semantics<parallel>], iteration_bounds = array<i64: 1>, scalar_prefetch = 0 : i64, scratch_operands = 0 : i64, tpu.core_type = #tpu.core_type<tc>, window_params = [{transform_indices = @transform_0, window_bounds = array<i64: 24, 128>}, {pipeline_mode = #tpu.pipeline_mode<synchronous>, transform_indices = @transform_1, window_bounds = array<i64: 128, 128>}, {pipeline_mode = #tpu.pipeline_mode<synchronous>, transform_indices = @transform_2, window_bounds = array<i64: 1, 128>}, {pipeline_mode = #tpu.pipeline_mode<synchronous>, transform_indices = @transform_3, window_bounds = array<i64: 1, 128, 128>}, {pipeline_mode = #tpu.pipeline_mode<synchronous>, transform_indices = @transform_4, window_bounds = array<i64: 1, 1, 128>}, {pipeline_mode = #tpu.pipeline_mode<synchronous>, transform_indices = @transform_5, window_bounds = array<i64: 128, 128>}, {pipeline_mode = #tpu.pipeline_mode<synchronous>, transform_indices = @transform_6, window_bounds = array<i64: 1, 128>}, {transform_indices = @transform_7, window_bounds = array<i64: 24, 128>}]} {
    %c0 = arith.constant 0 : index
    %c0_0 = arith.constant 0 : index
    %0 = vector.load %arg1[%c0, %c0_0] : memref<24x128xf32, #tpu.memory_space<vmem>>, vector<24x128xf32>
    %1 = arith.truncf %0 : vector<24x128xf32> to vector<24x128xbf16>
    %c0_1 = arith.constant 0 : index
    %c0_2 = arith.constant 0 : index
    %2 = vector.load %arg2[%c0_1, %c0_2] : memref<128x128xbf16, #tpu.memory_space<vmem>>, vector<128x128xbf16>
    %cst = arith.constant dense<0.000000e+00> : vector<24x128xf32>
    %3 = tpu.matmul %1, %2, %cst {dimension_numbers = #tpu.dot_dimension_numbers<[1], [0], [0], [1], [0, 0, 1, 1], [], []>} : vector<24x128xbf16>, vector<128x128xbf16>, vector<24x128xf32> -> vector<24x128xf32>
    %c0_3 = arith.constant 0 : index
    %c0_4 = arith.constant 0 : index
    %4 = vector.load %arg3[%c0_3, %c0_4] : memref<1x128xf32, #tpu.memory_space<vmem>>, vector<1x128xf32>
    %5 = vector.broadcast %4 : vector<1x128xf32> to vector<24x128xf32>
    %6 = arith.addf %3, %5 : vector<24x128xf32>
    %cst_5 = arith.constant 0.000000e+00 : f32
    %7 = vector.broadcast %cst_5 : f32 to vector<24x128xf32>
    %8 = arith.maximumf %6, %7 : vector<24x128xf32>
    %cst_6 = arith.constant 0.000000e+00 : f32
    %9 = vector.broadcast %cst_6 : f32 to vector<24x128xf32>
    %10 = arith.maximumf %8, %9 : vector<24x128xf32>
    %11 = arith.truncf %10 : vector<24x128xf32> to vector<24x128xbf16>
    %c0_7 = arith.constant 0 : index
    %c0_8 = arith.constant 0 : index
    %c0_9 = arith.constant 0 : index
    %12 = vector.load %arg4[%c0_7, %c0_8, %c0_9] : memref<1x128x128xbf16, #tpu.memory_space<vmem>>, vector<1x128x128xbf16>
    %13 = vector.shape_cast %12 : vector<1x128x128xbf16> to vector<128x128xbf16>
    %cst_10 = arith.constant dense<0.000000e+00> : vector<24x128xf32>
    %14 = tpu.matmul %11, %13, %cst_10 {dimension_numbers = #tpu.dot_dimension_numbers<[1], [0], [0], [1], [0, 0, 1, 1], [], []>} : vector<24x128xbf16>, vector<128x128xbf16>, vector<24x128xf32> -> vector<24x128xf32>
    %15 = arith.addf %8, %14 : vector<24x128xf32>
    %c0_11 = arith.constant 0 : index
    %c0_12 = arith.constant 0 : index
    %c0_13 = arith.constant 0 : index
    %16 = vector.load %arg5[%c0_11, %c0_12, %c0_13] : memref<1x1x128xf32, #tpu.memory_space<vmem>>, vector<1x1x128xf32>
    %17 = vector.shape_cast %16 : vector<1x1x128xf32> to vector<1x128xf32>
    %18 = vector.broadcast %17 : vector<1x128xf32> to vector<24x128xf32>
    %19 = arith.addf %15, %18 : vector<24x128xf32>
    %cst_14 = arith.constant 0.000000e+00 : f32
    %20 = vector.broadcast %cst_14 : f32 to vector<24x128xf32>
    %21 = arith.maximumf %19, %20 : vector<24x128xf32>
    %22 = arith.truncf %21 : vector<24x128xf32> to vector<24x128xbf16>
    %c0_15 = arith.constant 0 : index
    %c0_16 = arith.constant 0 : index
    %23 = vector.load %arg6[%c0_15, %c0_16] : memref<128x128xbf16, #tpu.memory_space<vmem>>, vector<128x128xbf16>
    %cst_17 = arith.constant dense<0.000000e+00> : vector<24x128xf32>
    %24 = tpu.matmul %22, %23, %cst_17 {dimension_numbers = #tpu.dot_dimension_numbers<[1], [0], [0], [1], [0, 0, 1, 1], [], []>} : vector<24x128xbf16>, vector<128x128xbf16>, vector<24x128xf32> -> vector<24x128xf32>
    %c0_18 = arith.constant 0 : index
    %c0_19 = arith.constant 0 : index
    %25 = vector.load %arg7[%c0_18, %c0_19] : memref<1x128xf32, #tpu.memory_space<vmem>>, vector<1x128xf32>
    %26 = vector.broadcast %25 : vector<1x128xf32> to vector<24x128xf32>
    %27 = arith.addf %24, %26 : vector<24x128xf32>
    %28 = arith.addf %27, %19 : vector<24x128xf32>
    %c0_20 = arith.constant 0 : index
    %c0_21 = arith.constant 0 : index
    %29 = vector.load %arg8[%c0_20, %c0_21] : memref<24x128xf32, #tpu.memory_space<vmem>>, vector<24x128xf32>
    tpu.vector_store %arg8[%c0_20, %c0_21], %28 {strides = array<i32>} : memref<24x128xf32, #tpu.memory_space<vmem>>, vector<24x128xf32>,
    return
  }
  func.func @transform_0(%arg0: i32) -> (i32, i32) {
    %c0_i32 = arith.constant 0 : i32
    %c0_i32_0 = arith.constant 0 : i32
    return %arg0, %c0_i32 : i32, i32
  }
  func.func @transform_1(%arg0: i32) -> (i32, i32) {
    %c0_i32 = arith.constant 0 : i32
    %c0_i32_0 = arith.constant 0 : i32
    %c0_i32_1 = arith.constant 0 : i32
    return %c0_i32, %c0_i32_0 : i32, i32
  }
  func.func @transform_2(%arg0: i32) -> (i32, i32) {
    %c0_i32 = arith.constant 0 : i32
    %c0_i32_0 = arith.constant 0 : i32
    %c0_i32_1 = arith.constant 0 : i32
    return %c0_i32, %c0_i32_0 : i32, i32
  }
  func.func @transform_3(%arg0: i32) -> (i32, i32, i32) {
    %c0_i32 = arith.constant 0 : i32
    %c0_i32_0 = arith.constant 0 : i32
    %c0_i32_1 = arith.constant 0 : i32
    %c0_i32_2 = arith.constant 0 : i32
    return %c0_i32, %c0_i32_0, %c0_i32_1 : i32, i32, i32
  }
  func.func @transform_4(%arg0: i32) -> (i32, i32, i32) {
    %c0_i32 = arith.constant 0 : i32
    %c0_i32_0 = arith.constant 0 : i32
    %c0_i32_1 = arith.constant 0 : i32
    %c0_i32_2 = arith.constant 0 : i32
    return %c0_i32, %c0_i32_0, %c0_i32_1 : i32, i32, i32
  }
  func.func @transform_5(%arg0: i32) -> (i32, i32) {
    %c0_i32 = arith.constant 0 : i32
    %c0_i32_0 = arith.constant 0 : i32
    %c0_i32_1 = arith.constant 0 : i32
    return %c0_i32, %c0_i32_0 : i32, i32
  }
  func.func @transform_6(%arg0: i32) -> (i32, i32) {
    %c0_i32 = arith.constant 0 : i32
    %c0_i32_0 = arith.constant 0 : i32
    %c0_i32_1 = arith.constant 0 : i32
    return %c0_i32, %c0_i32_0 : i32, i32
  }
  func.func @transform_7(%arg0: i32) -> (i32, i32) {
    %c0_i32 = arith.constant 0 : i32
    %c0_i32_0 = arith.constant 0 : i32
    return %arg0, %c0_i32 : i32, i32
  }
}

</mosaic_0001>

<llo_original>
// kernel: tpu_custom_call.1
$region0: #{tpu_custom_call.1}
  #allocation0 [shape = 'u32[]', space=smem, size = 0x4, offset = 0x4, fixed_abs, tag = 'smem constant byte address 0x4 - core index']
  #allocation1 [shape = 'u32[144,128]{1,0:T(1,128)}', space=vmem, size = 0x12000, scoped, tag = 'internal scratch']
  %s0 = inlined_call_operand.hbm [shape: f32[24,128], index: 0, kind: input, shape index: {}]
  %s1 = inlined_call_operand.hbm [shape: bf16[128,128], index: 1, kind: input, shape index: {}]
  %s2 = inlined_call_operand.vmem [shape: f32[1,128], index: 2, kind: input, shape index: {}]
  %s3 = inlined_call_operand.hbm [shape: bf16[1,128,128], index: 3, kind: input, shape index: {}]
  %s4 = inlined_call_operand.vmem [shape: f32[1,1,128], index: 4, kind: input, shape index: {}]
  %s5 = inlined_call_operand.hbm [shape: bf16[128,128], index: 5, kind: input, shape index: {}]
  %s6 = inlined_call_operand.vmem [shape: f32[1,128], index: 6, kind: input, shape index: {}]
  %s7 = inlined_call_operand.hbm [shape: f32[24,128], index: 7, kind: output, shape index: {}]
  %s8 = sld [smem:[#allocation0]]
  $region54: #{tpu_custom_call.1} parent=0
    _
  %s10 = ssub.s32 1, %s8
  %s11 = scalar_select 0, %s10, %s8
  $region1: #{tpu_custom_call.1} parent=0
    #allocation2 [shape = 'u8[12288]{0}', space=vmem, size = 0x3000, scoped, tag = 'input window, operand 0, single buffered']
    #allocation3 [shape = 's32[1]{0}', space=sflag, size = 0x4, scoped, tag = 'scoped memory for tpu_custom_call.1']
    #allocation4 [shape = 's32[1]{0}', space=sflag, size = 0x4, scoped, tag = 'scoped memory for tpu_custom_call.1']
    #allocation5 [shape = 'u8[32768]{0}', space=vmem, size = 0x8000, scoped, tag = 'input window, operand 1, single buffered']
    #allocation6 [shape = 's32[1]{0}', space=sflag, size = 0x4, scoped, tag = 'scoped memory for tpu_custom_call.1']
    #allocation7 [shape = 'u8[32768]{0}', space=vmem, size = 0x8000, scoped, tag = 'input window, operand 3, single buffered']
    #allocation8 [shape = 'u8[32768]{0}', space=vmem, size = 0x8000, scoped, tag = 'input window, operand 5, single buffered']
    #allocation9 [shape = 's32[1]{0}', space=sflag, size = 0x4, scoped, tag = 'scoped memory for tpu_custom_call.1']
    #allocation10 [shape = 'u8[12288]{0}', space=vmem, size = 0x3000, scoped, tag = 'output window, operand 0, single buffered']
    %12 = vsyncpa [#allocation3], 0
    %13 = vsyncpa [#allocation6], 0
    %14 = vsyncpa [#allocation9], 0
    %15 = vsyncpa [#allocation4], 0
    // Predicated region
    $region2: #{tpu_custom_call.1} parent=1 // pred_check
      _
    $region3: #{tpu_custom_call.1} parent=1 // pred_check_branch
      %17 = sbr.rel (0) target = $region5
    $region4: #{tpu_custom_call.1} parent=1 // pred_region
      %s19 = ssub.s32 384, 384
      %20 = vsyncadd [#allocation3], %s19
      %s21 = sshll.u32 [#allocation2], 4
      %s22 = int_to_ptr.vmem [resolvable:$true] %s21
      %27 = dma.hbm_to_vmem [thread:$0]  %s0, 384, %s22, [#allocation3], 128, 128, 8
    $region5: #{tpu_custom_call.1} parent=1 // pred_fallthru
      _
    // Predicated region
    $region6: #{tpu_custom_call.1} parent=1 // pred_check
      _
    $region7: #{tpu_custom_call.1} parent=1 // pred_check_branch
      %29 = sbr.rel (0) target = $region9
    $region8: #{tpu_custom_call.1} parent=1 // pred_region
      %s31 = ssub.s32 1024, 1024
      %32 = vsyncadd [#allocation6], %s31
      %s33 = sshll.u32 [#allocation5], 4
      %s34 = int_to_ptr.vmem [resolvable:$true] %s33
      %39 = dma.hbm_to_vmem [thread:$0]  %s1, 1024, %s34, [#allocation6], 64, 64, 4
    $region9: #{tpu_custom_call.1} parent=1 // pred_fallthru
      _
    // Predicated region
    $region10: #{tpu_custom_call.1} parent=1 // pred_check
      _
    $region11: #{tpu_custom_call.1} parent=1 // pred_check_branch
      %41 = sbr.rel (0) target = $region13
    $region12: #{tpu_custom_call.1} parent=1 // pred_region
      _
    $region13: #{tpu_custom_call.1} parent=1 // pred_fallthru
      _
    // Predicated region
    $region14: #{tpu_custom_call.1} parent=1 // pred_check
      _
    $region15: #{tpu_custom_call.1} parent=1 // pred_check_branch
      %43 = sbr.rel (0) target = $region17
    $region16: #{tpu_custom_call.1} parent=1 // pred_region
      %s45 = ssub.s32 1024, 1024
      %46 = vsyncadd [#allocation6], %s45
      %s47 = sshll.u32 [#allocation7], 4
      %s48 = int_to_ptr.vmem [resolvable:$true] %s47
      %53 = dma.hbm_to_vmem [thread:$0]  %s3, 1024, %s48, [#allocation6], 64, 64, 4
    $region17: #{tpu_custom_call.1} parent=1 // pred_fallthru
      _
    // Predicated region
    $region18: #{tpu_custom_call.1} parent=1 // pred_check
      _
    $region19: #{tpu_custom_call.1} parent=1 // pred_check_branch
      %55 = sbr.rel (0) target = $region21
    $region20: #{tpu_custom_call.1} parent=1 // pred_region
      _
    $region21: #{tpu_custom_call.1} parent=1 // pred_fallthru
      _
    // Predicated region
    $region22: #{tpu_custom_call.1} parent=1 // pred_check
      _
    $region23: #{tpu_custom_call.1} parent=1 // pred_check_branch
      %57 = sbr.rel (0) target = $region25
    $region24: #{tpu_custom_call.1} parent=1 // pred_region
      %s59 = ssub.s32 1024, 1024
      %60 = vsyncadd [#allocation9], %s59
      %s61 = sshll.u32 [#allocation8], 4
      %s62 = int_to_ptr.vmem [resolvable:$true] %s61
      %67 = dma.hbm_to_vmem [thread:$0]  %s5, 1024, %s62, [#allocation9], 64, 64, 4
    $region25: #{tpu_custom_call.1} parent=1 // pred_fallthru
      _
    // Predicated region
    $region26: #{tpu_custom_call.1} parent=1 // pred_check
      _
    $region27: #{tpu_custom_call.1} parent=1 // pred_check_branch
      %69 = sbr.rel (0) target = $region29
    $region28: #{tpu_custom_call.1} parent=1 // pred_region
      _
    $region29: #{tpu_custom_call.1} parent=1 // pred_fallthru
      _
    // Predicated region
    $region30: #{tpu_custom_call.1} parent=1 // pred_check
      _
    $region31: #{tpu_custom_call.1} parent=1 // pred_check_branch
      %71 = sbr.rel (0) target = $region33
    $region32: #{tpu_custom_call.1} parent=1 // pred_region
      %72 = dma.done [#allocation3], 384
    $region33: #{tpu_custom_call.1} parent=1 // pred_fallthru
      _
    // Predicated region
    $region34: #{tpu_custom_call.1} parent=1 // pred_check
      _
    $region35: #{tpu_custom_call.1} parent=1 // pred_check_branch
      %74 = sbr.rel (0) target = $region37
    $region36: #{tpu_custom_call.1} parent=1 // pred_region
      %75 = dma.done [#allocation6], 1024
    $region37: #{tpu_custom_call.1} parent=1 // pred_fallthru
      _
    // Predicated region
    $region38: #{tpu_custom_call.1} parent=1 // pred_check
      _
    $region39: #{tpu_custom_call.1} parent=1 // pred_check_branch
      %77 = sbr.rel (0) target = $region41
    $region40: #{tpu_custom_call.1} parent=1 // pred_region
      %78 = dma.done [#allocation6], 1024
    $region41: #{tpu_custom_call.1} parent=1 // pred_fallthru
      _
    // Predicated region
    $region42: #{tpu_custom_call.1} parent=1 // pred_check
      _
    $region43: #{tpu_custom_call.1} parent=1 // pred_check_branch
      %80 = sbr.rel (0) target = $region45
    $region44: #{tpu_custom_call.1} parent=1 // pred_region
      %81 = dma.done [#allocation9], 1024
    $region45: #{tpu_custom_call.1} parent=1 // pred_fallthru
      _
    %v83 = vld [vmem:[#allocation2] sm:$0xff]
    %v84 = vld [vmem:[#allocation2 + $0x8] sm:$0xff]
    %v85 = vld [vmem:[#allocation2 + $0x10] sm:$0xff]
    %v86 = vpack.c.bf16 %v84, %v83
    %v87 = vpack.c.bf16 %v85, %v85
    %v88 = vld [vmem:[#allocation5] sm:$0xf]
    %v89 = vld [vmem:[#allocation5 + $0x4] sm:$0xf]
    %v90 = vld [vmem:[#allocation5 + $0x8] sm:$0xf]
    %v91 = vld [vmem:[#allocation5 + $0xc] sm:$0xf]
    %v92 = vld [vmem:[#allocation5 + $0x10] sm:$0xf]
    %v93 = vld [vmem:[#allocation5 + $0x14] sm:$0xf]
    %v94 = vld [vmem:[#allocation5 + $0x18] sm:$0xf]
    %v95 = vld [vmem:[#allocation5 + $0x1c] sm:$0xf]
    %v96 = vld [vmem:[#allocation5 + $0x20] sm:$0xf]
    %v97 = vld [vmem:[#allocation5 + $0x24] sm:$0xf]
    %v98 = vld [vmem:[#allocation5 + $0x28] sm:$0xf]
    %v99 = vld [vmem:[#allocation5 + $0x2c] sm:$0xf]
    %v100 = vld [vmem:[#allocation5 + $0x30] sm:$0xf]
    %v101 = vld [vmem:[#allocation5 + $0x34] sm:$0xf]
    %v102 = vld [vmem:[#allocation5 + $0x38] sm:$0xf]
    %v103 = vld [vmem:[#allocation5 + $0x3c] sm:$0xf]
    %v104 = vld [vmem:[%s2] sm:$0x1]
    %v106 = vlaneseq
    %v107 = vshrl.u32 %v106, 7
    %v108 = vsub.s32 0, %v107
    %v109 = vrot.slane %v104, %v108
    %v127 = vunpack.c.l.b16 %v88
    %v128 = vunpack.c.l.b16 %v89
    %v129 = vunpack.c.l.b16 %v90
    %v130 = vunpack.c.l.b16 %v91
    %v131 = vunpack.c.l.b16 %v92
    %v132 = vunpack.c.l.b16 %v93
    %v133 = vunpack.c.l.b16 %v94
    %v134 = vunpack.c.l.b16 %v95
    %v135 = vunpack.c.l.b16 %v96
    %v136 = vunpack.c.l.b16 %v97
    %v137 = vunpack.c.l.b16 %v98
    %v138 = vunpack.c.l.b16 %v99
    %v139 = vunpack.c.l.b16 %v100
    %v140 = vunpack.c.l.b16 %v101
    %v141 = vunpack.c.l.b16 %v102
    %v142 = vunpack.c.l.b16 %v103
    %v143 = vpack.c.b16 %v128, %v127
    %v144 = vpack.c.b16 %v130, %v129
    %v145 = vpack.c.b16 %v132, %v131
    %v146 = vpack.c.b16 %v134, %v133
    %v147 = vpack.c.b16 %v136, %v135
    %v148 = vpack.c.b16 %v138, %v137
    %v149 = vpack.c.b16 %v140, %v139
    %v150 = vpack.c.b16 %v142, %v141
    %159 = vmatprep.subr.bf16.mxu0 0
    %160 = vmatpush1.bf16.msra.mxu0 %v143
    %161 = vmatprep.subr.bf16.mxu0 0
    %162 = vmatpush1.bf16.msra.mxu0 %v144
    %163 = vmatprep.subr.bf16.mxu0 0
    %164 = vmatpush1.bf16.msra.mxu0 %v145
    %165 = vmatprep.subr.bf16.mxu0 0
    %166 = vmatpush1.bf16.msra.mxu0 %v146
    %167 = vmatprep.subr.bf16.mxu0 0
    %168 = vmatpush1.bf16.msra.mxu0 %v147
    %169 = vmatprep.subr.bf16.mxu0 0
    %170 = vmatpush1.bf16.msra.mxu0 %v148
    %171 = vmatprep.subr.bf16.mxu0 0
    %172 = vmatpush1.bf16.msra.mxu0 %v149
    %173 = vmatprep.subr.bf16.mxu0 0
    %174 = vmatpush1.bf16.msra.mxu0 %v150
    %175 = vmatprep.subr.bf16.mxu0 0
    %176 = vmatpush1.bf16.msra.mxu0 0
    %177 = vmatprep.subr.bf16.mxu0 0
    %178 = vmatpush1.bf16.msra.mxu0 0
    %179 = vmatprep.subr.bf16.mxu0 0
    %180 = vmatpush1.bf16.msra.mxu0 0
    %181 = vmatprep.subr.bf16.mxu0 0
    %182 = vmatpush1.bf16.msra.mxu0 0
    %183 = vmatprep.subr.bf16.mxu0 0
    %184 = vmatpush1.bf16.msra.mxu0 0
    %185 = vmatprep.subr.bf16.mxu0 0
    %186 = vmatpush1.bf16.msra.mxu0 0
    %187 = vmatprep.subr.bf16.mxu0 0
    %188 = vmatpush1.bf16.msra.mxu0 0
    %189 = vmatprep.subr.bf16.mxu0 0
    %190 = vmatpush1.bf16.msra.mxu0 0
    %191 = vmatprep.mubr.bf16.mxu0 0
    %192 = vmatmul.mubr.bf16.gmra.mrb[0].mxu0 %v86
    %v193 = vpop.f32.mrb[0].mxu0
    %v194 = vadd.f32 %v109, %v193
    %v195 = vpop.f32.mrb[0].mxu0
    %v196 = vpop.f32.mrb[0].mxu0
    %v197 = vadd.f32 %v109, %v196
    %v198 = vpop.f32.mrb[0].mxu0
    %199 = vmatprep.mubr.bf16.mxu0 0
    %200 = vmatmul.mubr.bf16.gmra.mrb[0].mxu0 %v87
    %v201 = vpop.f32.mrb[0].mxu0
    %v202 = vadd.f32 %v109, %v201
    %v203 = vpop.f32.mrb[0].mxu0
    %v204 = vpop.f32.mrb[0].mxu0
    %v205 = vpop.f32.mrb[0].mxu0
    %206 = vdwg.mxu0
    %v207 = vmax.f32 %v194, 0.0
    %v208 = vmax.f32 %v197, 0.0
    %v209 = vmax.f32 %v202, 0.0
    %v210 = vmax.f32 %v207, 0.0
    %v211 = vmax.f32 %v208, 0.0
    %v212 = vmax.f32 %v209, 0.0
    %v213 = vpack.c.bf16 %v211, %v210
    %v214 = vpack.c.bf16 %v212, %v212
    %v215 = vld [vmem:[#allocation7] sm:$0xf]
    %v216 = vld [vmem:[#allocation7 + $0x4] sm:$0xf]
    %v217 = vld [vmem:[#allocation7 + $0x8] sm:$0xf]
    %v218 = vld [vmem:[#allocation7 + $0xc] sm:$0xf]
    %v219 = vld [vmem:[#allocation7 + $0x10] sm:$0xf]
    %v220 = vld [vmem:[#allocation7 + $0x14] sm:$0xf]
    %v221 = vld [vmem:[#allocation7 + $0x18] sm:$0xf]
    %v222 = vld [vmem:[#allocation7 + $0x1c] sm:$0xf]
    %v223 = vld [vmem:[#allocation7 + $0x20] sm:$0xf]
    %v224 = vld [vmem:[#allocation7 + $0x24] sm:$0xf]
    %v225 = vld [vmem:[#allocation7 + $0x28] sm:$0xf]
    %v226 = vld [vmem:[#allocation7 + $0x2c] sm:$0xf]
    %v227 = vld [vmem:[#allocation7 + $0x30] sm:$0xf]
    %v228 = vld [vmem:[#allocation7 + $0x34] sm:$0xf]
    %v229 = vld [vmem:[#allocation7 + $0x38] sm:$0xf]
    %v230 = vld [vmem:[#allocation7 + $0x3c] sm:$0xf]
    %v247 = vunpack.c.l.b16 %v215
    %v248 = vunpack.c.l.b16 %v216
    %v249 = vunpack.c.l.b16 %v217
    %v250 = vunpack.c.l.b16 %v218
    %v251 = vunpack.c.l.b16 %v219
    %v252 = vunpack.c.l.b16 %v220
    %v253 = vunpack.c.l.b16 %v221
    %v254 = vunpack.c.l.b16 %v222
    %v255 = vunpack.c.l.b16 %v223
    %v256 = vunpack.c.l.b16 %v224
    %v257 = vunpack.c.l.b16 %v225
    %v258 = vunpack.c.l.b16 %v226
    %v259 = vunpack.c.l.b16 %v227
    %v260 = vunpack.c.l.b16 %v228
    %v261 = vunpack.c.l.b16 %v229
    %v262 = vunpack.c.l.b16 %v230
    %v263 = vpack.c.b16 %v248, %v247
    %v264 = vpack.c.b16 %v250, %v249
    %v265 = vpack.c.b16 %v252, %v251
    %v266 = vpack.c.b16 %v254, %v253
    %v267 = vpack.c.b16 %v256, %v255
    %v268 = vpack.c.b16 %v258, %v257
    %v269 = vpack.c.b16 %v260, %v259
    %v270 = vpack.c.b16 %v262, %v261
    %279 = vmatprep.subr.bf16.mxu0 0
    %280 = vmatpush1.bf16.msra.mxu0 %v263
    %281 = vmatprep.subr.bf16.mxu0 0
    %282 = vmatpush1.bf16.msra.mxu0 %v264
    %283 = vmatprep.subr.bf16.mxu0 0
    %284 = vmatpush1.bf16.msra.mxu0 %v265
    %285 = vmatprep.subr.bf16.mxu0 0
    %286 = vmatpush1.bf16.msra.mxu0 %v266
    %287 = vmatprep.subr.bf16.mxu0 0
    %288 = vmatpush1.bf16.msra.mxu0 %v267
    %289 = vmatprep.subr.bf16.mxu0 0
    %290 = vmatpush1.bf16.msra.mxu0 %v268
    %291 = vmatprep.subr.bf16.mxu0 0
    %292 = vmatpush1.bf16.msra.mxu0 %v269
    %293 = vmatprep.subr.bf16.mxu0 0
    %294 = vmatpush1.bf16.msra.mxu0 %v270
    %295 = vmatprep.subr.bf16.mxu0 0
    %296 = vmatpush1.bf16.msra.mxu0 0
    %297 = vmatprep.subr.bf16.mxu0 0
    %298 = vmatpush1.bf16.msra.mxu0 0
    %299 = vmatprep.subr.bf16.mxu0 0
    %300 = vmatpush1.bf16.msra.mxu0 0
    %301 = vmatprep.subr.bf16.mxu0 0
    %302 = vmatpush1.bf16.msra.mxu0 0
    %303 = vmatprep.subr.bf16.mxu0 0
    %304 = vmatpush1.bf16.msra.mxu0 0
    %305 = vmatprep.subr.bf16.mxu0 0
    %306 = vmatpush1.bf16.msra.mxu0 0
    %307 = vmatprep.subr.bf16.mxu0 0
    %308 = vmatpush1.bf16.msra.mxu0 0
    %309 = vmatprep.subr.bf16.mxu0 0
    %310 = vmatpush1.bf16.msra.mxu0 0
    %311 = vmatprep.mubr.bf16.mxu0 0
    %312 = vmatmul.mubr.bf16.gmra.mrb[0].mxu0 %v213
    %v313 = vpop.f32.mrb[0].mxu0
    %v314 = vadd.f32 0.0, %v313
    %v315 = vpop.f32.mrb[0].mxu0
    %v316 = vpop.f32.mrb[0].mxu0
    %v317 = vadd.f32 0.0, %v316
    %v318 = vpop.f32.mrb[0].mxu0
    %319 = vmatprep.mubr.bf16.mxu0 0
    %320 = vmatmul.mubr.bf16.gmra.mrb[0].mxu0 %v214
    %v321 = vpop.f32.mrb[0].mxu0
    %v322 = vadd.f32 0.0, %v321
    %v323 = vpop.f32.mrb[0].mxu0
    %v324 = vpop.f32.mrb[0].mxu0
    %v325 = vpop.f32.mrb[0].mxu0
    %326 = vdwg.mxu0
    %v327 = vadd.f32 %v207, %v314
    %v328 = vadd.f32 %v208, %v317
    %v329 = vadd.f32 %v209, %v322
    %v330 = vld [vmem:[%s4] sm:$0x1]
    %v332 = vlaneseq
    %v333 = vshrl.u32 %v332, 7
    %v334 = vsub.s32 0, %v333
    %v335 = vrot.slane %v330, %v334
    %v337 = vadd.f32 %v327, %v335
    %v338 = vadd.f32 %v328, %v335
    %v339 = vadd.f32 %v329, %v335
    %v340 = vmax.f32 %v337, 0.0
    %v341 = vmax.f32 %v338, 0.0
    %v342 = vmax.f32 %v339, 0.0
    %v343 = vpack.c.bf16 %v341, %v340
    %v344 = vpack.c.bf16 %v342, %v342
    %v345 = vld [vmem:[#allocation8] sm:$0xf]
    %v346 = vld [vmem:[#allocation8 + $0x4] sm:$0xf]
    %v347 = vld [vmem:[#allocation8 + $0x8] sm:$0xf]
    %v348 = vld [vmem:[#allocation8 + $0xc] sm:$0xf]
    %v349 = vld [vmem:[#allocation8 + $0x10] sm:$0xf]
    %v350 = vld [vmem:[#allocation8 + $0x14] sm:$0xf]
    %v351 = vld [vmem:[#allocation8 + $0x18] sm:$0xf]
    %v352 = vld [vmem:[#allocation8 + $0x1c] sm:$0xf]
    %v353 = vld [vmem:[#allocation8 + $0x20] sm:$0xf]
    %v354 = vld [vmem:[#allocation8 + $0x24] sm:$0xf]
    %v355 = vld [vmem:[#allocation8 + $0x28] sm:$0xf]
    %v356 = vld [vmem:[#allocation8 + $0x2c] sm:$0xf]
    %v357 = vld [vmem:[#allocation8 + $0x30] sm:$0xf]
    %v358 = vld [vmem:[#allocation8 + $0x34] sm:$0xf]
    %v359 = vld [vmem:[#allocation8 + $0x38] sm:$0xf]
    %v360 = vld [vmem:[#allocation8 + $0x3c] sm:$0xf]
    %v361 = vld [vmem:[%s6] sm:$0x1]
    %v363 = vlaneseq
    %v364 = vshrl.u32 %v363, 7
    %v365 = vsub.s32 0, %v364
    %v366 = vrot.slane %v361, %v365
    %v384 = vunpack.c.l.b16 %v345
    %v385 = vunpack.c.l.b16 %v346
    %v386 = vunpack.c.l.b16 %v347
    %v387 = vunpack.c.l.b16 %v348
    %v388 = vunpack.c.l.b16 %v349
    %v389 = vunpack.c.l.b16 %v350
    %v390 = vunpack.c.l.b16 %v351
    %v391 = vunpack.c.l.b16 %v352
    %v392 = vunpack.c.l.b16 %v353
    %v393 = vunpack.c.l.b16 %v354
    %v394 = vunpack.c.l.b16 %v355
    %v395 = vunpack.c.l.b16 %v356
    %v396 = vunpack.c.l.b16 %v357
    %v397 = vunpack.c.l.b16 %v358
    %v398 = vunpack.c.l.b16 %v359
    %v399 = vunpack.c.l.b16 %v360
    %v400 = vpack.c.b16 %v385, %v384
    %v401 = vpack.c.b16 %v387, %v386
    %v402 = vpack.c.b16 %v389, %v388
    %v403 = vpack.c.b16 %v391, %v390
    %v404 = vpack.c.b16 %v393, %v392
    %v405 = vpack.c.b16 %v395, %v394
    %v406 = vpack.c.b16 %v397, %v396
    %v407 = vpack.c.b16 %v399, %v398
    %416 = vmatprep.subr.bf16.mxu0 0
    %417 = vmatpush1.bf16.msra.mxu0 %v400
    %418 = vmatprep.subr.bf16.mxu0 0
    %419 = vmatpush1.bf16.msra.mxu0 %v401
    %420 = vmatprep.subr.bf16.mxu0 0
    %421 = vmatpush1.bf16.msra.mxu0 %v402
    %422 = vmatprep.subr.bf16.mxu0 0
    %423 = vmatpush1.bf16.msra.mxu0 %v403
    %424 = vmatprep.subr.bf16.mxu0 0
    %425 = vmatpush1.bf16.msra.mxu0 %v404
    %426 = vmatprep.subr.bf16.mxu0 0
    %427 = vmatpush1.bf16.msra.mxu0 %v405
    %428 = vmatprep.subr.bf16.mxu0 0
    %429 = vmatpush1.bf16.msra.mxu0 %v406
    %430 = vmatprep.subr.bf16.mxu0 0
    %431 = vmatpush1.bf16.msra.mxu0 %v407
    %432 = vmatprep.subr.bf16.mxu0 0
    %433 = vmatpush1.bf16.msra.mxu0 0
    %434 = vmatprep.subr.bf16.mxu0 0
    %435 = vmatpush1.bf16.msra.mxu0 0
    %436 = vmatprep.subr.bf16.mxu0 0
    %437 = vmatpush1.bf16.msra.mxu0 0
    %438 = vmatprep.subr.bf16.mxu0 0
    %439 = vmatpush1.bf16.msra.mxu0 0
    %440 = vmatprep.subr.bf16.mxu0 0
    %441 = vmatpush1.bf16.msra.mxu0 0
    %442 = vmatprep.subr.bf16.mxu0 0
    %443 = vmatpush1.bf16.msra.mxu0 0
    %444 = vmatprep.subr.bf16.mxu0 0
    %445 = vmatpush1.bf16.msra.mxu0 0
    %446 = vmatprep.subr.bf16.mxu0 0
    %447 = vmatpush1.bf16.msra.mxu0 0
    %448 = vmatprep.mubr.bf16.mxu0 0
    %449 = vmatmul.mubr.bf16.gmra.mrb[0].mxu0 %v343
    %v450 = vpop.f32.mrb[0].mxu0
    %v451 = vadd.f32 %v366, %v450
    %v452 = vpop.f32.mrb[0].mxu0
    %v453 = vpop.f32.mrb[0].mxu0
    %v454 = vadd.f32 %v366, %v453
    %v455 = vpop.f32.mrb[0].mxu0
    %456 = vmatprep.mubr.bf16.mxu0 0
    %457 = vmatmul.mubr.bf16.gmra.mrb[0].mxu0 %v344
    %v458 = vpop.f32.mrb[0].mxu0
    %v459 = vadd.f32 %v366, %v458
    %v460 = vpop.f32.mrb[0].mxu0
    %v461 = vpop.f32.mrb[0].mxu0
    %v462 = vpop.f32.mrb[0].mxu0
    %463 = vdwg.mxu0
    %v464 = vadd.f32 %v451, %v337
    %v465 = vadd.f32 %v454, %v338
    %v466 = vadd.f32 %v459, %v339
    %467 = vst [vmem:[#allocation10] sm:$0xff] %v464
    %468 = vst [vmem:[#allocation10 + $0x8] sm:$0xff] %v465
    %469 = vst [vmem:[#allocation10 + $0x10] sm:$0xff] %v466
    // Predicated region
    $region46: #{tpu_custom_call.1} parent=1 // pred_check
      _
    $region47: #{tpu_custom_call.1} parent=1 // pred_check_branch
      %471 = sbr.rel (0) target = $region49
    $region48: #{tpu_custom_call.1} parent=1 // pred_region
      %s473 = ssub.s32 384, 384
      %474 = vsyncadd [#allocation4], %s473
      %s475 = sshll.u32 [#allocation10], 4
      %s476 = int_to_ptr.vmem [resolvable:$true] %s475
      %481 = dma.vmem_to_hbm [thread:$0]  %s476, 384, %s7, [#allocation4], 128, 128, 8
    $region49: #{tpu_custom_call.1} parent=1 // pred_fallthru
      _
    // Predicated region
    $region50: #{tpu_custom_call.1} parent=1 // pred_check
      _
    $region51: #{tpu_custom_call.1} parent=1 // pred_check_branch
      %483 = sbr.rel (0) target = $region53
    $region52: #{tpu_custom_call.1} parent=1 // pred_region
      %484 = dma.done [#allocation4], 384
    $region53: #{tpu_custom_call.1} parent=1 // pred_fallthru
      _
    %485 = vsyncpa [#allocation3], 1
    %486 = vsyncpa [#allocation6], 1
    %487 = vsyncpa [#allocation9], 1
    %488 = vsyncpa [#allocation4], 1

</llo_original>
